<compile_context>
chip_gen: v5e
topology: v5e:2x2
jax: 0.10.0
libtpu: 0.0.40
codegen_flags: <defaults>
</compile_context>

<pallas_src>
import math

import jax
import jax.numpy as jnp
from jax.experimental import pallas as pl
from jax.experimental.pallas import tpu as pltpu


# ---------------------------------------------------------------------------
# Kernel
# ---------------------------------------------------------------------------
def _quad_linear_kernel(x_ref, wrg_ref, wb_ref, brg_ref, bb_ref, o_ref,
                        acc_rg_ref, acc_b_ref):
    # x_ref:    (tm, tk)     activation tile
    # wrg_ref:  (tk, 2*tn)   [W_r^T tile | W_g^T tile] interleaved per N-tile
    # wb_ref:   (tk, tn)     W_b^T tile
    # brg_ref:  (1, 2*tn)    [b_r tile | b_g tile]
    # bb_ref:   (1, tn)      b_b tile
    # o_ref:    (tm, tn)     output tile
    # acc_rg:   (tm, 2*tn)   f32 accumulator for the fused r/g dot
    # acc_b:    (tm, tn)     f32 accumulator for the b dot
    k = pl.program_id(2)

    @pl.when(k == 0)
    def _():
        # Fold biases into the accumulator init: removes the epilogue bias
        # adds/loads from every (i, j) tile.
        acc_rg_ref[...] = jnp.broadcast_to(
            brg_ref[...].astype(jnp.float32), acc_rg_ref.shape)
        acc_b_ref[...] = jnp.broadcast_to(
            bb_ref[...].astype(jnp.float32), acc_b_ref.shape)

    x = x_ref[...]
    # Fused r+g matmul: one wide MXU dot sharing the same LHS.
    acc_rg_ref[...] += jnp.dot(x, wrg_ref[...],
                               preferred_element_type=jnp.float32)
    # Square stays in-kernel (single VPU op per tile; no extra HBM traffic).
    acc_b_ref[...] += jnp.dot(x * x, wb_ref[...],
                              preferred_element_type=jnp.float32)

    @pl.when(k == pl.num_programs(2) - 1)
    def _():
        tn = o_ref.shape[1]
        yr = acc_rg_ref[:, :tn]
        yg = acc_rg_ref[:, tn:]
        o_ref[...] = (yr * yg + acc_b_ref[...]).astype(o_ref.dtype)


# ---------------------------------------------------------------------------
# Helpers
# ---------------------------------------------------------------------------
def _round_up(x, m):
    return (x + m - 1) // m * m


def _pad2(a, rows, cols):
    r, c = a.shape
    if r == rows and c == cols:
        return a
    return jnp.pad(a, ((0, rows - r), (0, cols - c)))


def _largest_divisor_tile(padded, candidates):
    for t in candidates:
        if t <= padded and padded % t == 0:
            return t
    return padded


def _vmem_limit_bytes():
    """~75% of physical VMEM, capped at 100 MiB; conservative fallback."""
    try:
        cap = pltpu.get_tpu_info().vmem_capacity_bytes
    except Exception:
        cap = 64 * 1024 * 1024  # safe on every generation
    return max(32 * 1024 * 1024, min(int(cap * 0.75), 100 * 1024 * 1024))


def _footprint_bytes(tm, tk, tn, in_itemsize, out_itemsize):
    """Double-buffered input/output tiles + f32 accumulators."""
    fp = 0
    fp += 2 * tm * tk * in_itemsize          # x
    fp += 2 * tk * 2 * tn * in_itemsize      # wrg
    fp += 2 * tk * tn * in_itemsize          # wb
    fp += 2 * (2 * tn + tn) * in_itemsize    # biases
    fp += 2 * tm * tn * out_itemsize         # out
    fp += tm * 2 * tn * 4 + tm * tn * 4      # accumulators
    return fp


def _select_m_k_tiles(m, kp, tn, in_itemsize, out_itemsize, budget, m_align):
    m_cap = _round_up(max(int(m), 1), m_align)
    tm_cands = [t for t in (1024, 512, 256, 128, 64, 32, 16, 8)
                if t <= m_cap and t % m_align == 0]
    if not tm_cands:
        tm_cands = [m_cap]
    tk_cands = [t for t in (1024, 512, 256, 128) if kp % t == 0]
    if not tk_cands:
        tk_cands = [kp]
    # Prefer the largest M tile (halves weight re-streaming per M step), then
    # the largest K tile (fewer accumulator RMW steps), subject to VMEM budget.
    for tm in tm_cands:
        for tk in tk_cands:
            if _footprint_bytes(tm, tk, tn, in_itemsize, out_itemsize) <= budget:
                return tm, tk
    return tm_cands[-1], tk_cands[-1]


# ---------------------------------------------------------------------------
# One-time parameter preprocessing (hoisted out of the per-call hot path)
# ---------------------------------------------------------------------------
def prepare_params(weight_r, weight_g, weight_b, bias_r, bias_g, bias_b,
                   compute_dtype=None):
    """Pre-transpose / pad / interleave the weights once.

    Returns a dict consumed by linear_quadratic(). compute_dtype=jnp.bfloat16
    feeds the MXU its native dtype (f32 accumulation kept); default keeps the
    parameter dtype.
    """
    out_features, in_features = weight_r.shape
    dtype = jnp.dtype(compute_dtype) if compute_dtype is not None \
        else jnp.dtype(weight_r.dtype)

    np_ = _round_up(out_features, 128)
    kp = _round_up(in_features, 128)
    tn = _largest_divisor_tile(np_, (512, 256, 128))

    wr_t = _pad2(weight_r.astype(dtype).T, kp, np_)
    wg_t = _pad2(weight_g.astype(dtype).T, kp, np_)
    wb_t = _pad2(weight_b.astype(dtype).T, kp, np_)

    br_p = jnp.pad(bias_r.astype(dtype), (0, np_ - out_features))
    bg_p = jnp.pad(bias_g.astype(dtype), (0, np_ - out_features))
    bb_p = jnp.pad(bias_b.astype(dtype), (0, np_ - out_features)).reshape(1, np_)

    # Fuse r/g weights tile-interleaved along the output axis:
    # columns [j*2tn : j*2tn+tn] = W_r^T N-tile j, next tn = W_g^T N-tile j.
    n_tiles = np_ // tn
    wrg = jnp.concatenate(
        [wr_t.reshape(kp, n_tiles, 1, tn), wg_t.reshape(kp, n_tiles, 1, tn)],
        axis=2).reshape(kp, 2 * np_)
    brg = jnp.concatenate(
        [br_p.reshape(n_tiles, 1, tn), bg_p.reshape(n_tiles, 1, tn)],
        axis=1).reshape(1, 2 * np_)

    return dict(wrg=wrg, wb=wb_t, brg=brg, bb=bb_p,
                in_features=in_features, out_features=out_features,
                kp=kp, np_=np_, tn=tn, compute_dtype=dtype)


# ---------------------------------------------------------------------------
# Forward
# ---------------------------------------------------------------------------
def linear_quadratic(x, prepped):
    """Applies the quadratic linear layer to x of shape (N, *, in_features)."""
    in_features = prepped["in_features"]
    out_features = prepped["out_features"]
    kp, np_, tn = prepped["kp"], prepped["np_"], prepped["tn"]
    cdtype = prepped["compute_dtype"]
    assert x.shape[-1] == in_features

    out_dtype = x.dtype
    lead_shape = x.shape[:-1]
    m = int(math.prod(lead_shape)) if lead_shape else 1

    in_itemsize = jnp.dtype(cdtype).itemsize
    out_itemsize = jnp.dtype(out_dtype).itemsize
    # Align M tiles to the compute dtype's sublane packing (8 f32 / 16 bf16 / 32 i8).
    m_align = {4: 8, 2: 16, 1: 32}.get(in_itemsize, 8)

    vmem_limit = _vmem_limit_bytes()
    budget = int(vmem_limit * 0.9)
    tm, tk = _select_m_k_tiles(m, kp, tn, in_itemsize, out_itemsize,
                               budget, m_align)

    # If the parallel (M, N) grid would be a single tile, split M so both v7x
    # TensorCores get work (harmless on single-TC chips).
    if (np_ // tn) == 1 and _round_up(max(m, 1), tm) // tm == 1 and tm >= 2 * m_align:
        tm //= 2

    mp = _round_up(max(m, 1), tm)

    x2d = x.reshape(m, in_features).astype(cdtype)
    x2d_p = _pad2(x2d, mp, kp)     # padded K cols / M rows contribute exact zeros

    grid = (mp // tm, np_ // tn, kp // tk)

    out_p = pl.pallas_call(
        _quad_linear_kernel,
        out_shape=jax.ShapeDtypeStruct((mp, np_), out_dtype),
        grid_spec=pltpu.PrefetchScalarGridSpec(
            num_scalar_prefetch=0,
            grid=grid,
            in_specs=[
                pl.BlockSpec((tm, tk), lambda i, j, k: (i, k)),        # x
                pl.BlockSpec((tk, 2 * tn), lambda i, j, k: (k, j)),    # W_rg
                pl.BlockSpec((tk, tn), lambda i, j, k: (k, j)),        # W_b
                pl.BlockSpec((1, 2 * tn), lambda i, j, k: (0, j)),     # b_rg
                pl.BlockSpec((1, tn), lambda i, j, k: (0, j)),         # b_b
            ],
            out_specs=pl.BlockSpec((tm, tn), lambda i, j, k: (i, j)),
            scratch_shapes=[
                pltpu.VMEM((tm, 2 * tn), jnp.float32),  # acc for fused r/g
                pltpu.VMEM((tm, tn), jnp.float32),      # acc for b
            ],
        ),
        compiler_params=pltpu.CompilerParams(
            dimension_semantics=("parallel", "parallel", "arbitrary"),
            vmem_limit_bytes=vmem_limit,
        ),
    )(x2d_p, prepped["wrg"], prepped["wb"], prepped["brg"], prepped["bb"])

    out2d = out_p[:m, :out_features]
    return out2d.reshape(*lead_shape, out_features)


def linear_quadratic_apply(x, weight_r, weight_g, weight_b,
                           bias_r, bias_g, bias_b, compute_dtype=None):
    """Convenience one-shot path (preps params inline; prefer prepare_params
    + linear_quadratic when calling repeatedly with the same weights)."""
    prepped = prepare_params(weight_r, weight_g, weight_b,
                             bias_r, bias_g, bias_b, compute_dtype)
    return linear_quadratic(x, prepped)


# ---------------------------------------------------------------------------
# Init (mirrors the module's reset_parameters) + pure-JAX reference
# ---------------------------------------------------------------------------
def init_params(key, in_features, out_features, dtype=jnp.float32):
    """kaiming_uniform_(a=0) -> U(-sqrt(6/fan_in), sqrt(6/fan_in)) weights,
    U(-1/sqrt(fan_in), 1/sqrt(fan_in)) biases."""
    k_wr, k_wg, k_wb, k_br, k_bg, k_bb = jax.random.split(key, 6)
    w_bound = math.sqrt(6.0 / in_features)
    b_bound = 1.0 / math.sqrt(in_features)
    wshape = (out_features, in_features)
    weight_r = jax.random.uniform(k_wr, wshape, dtype, -w_bound, w_bound)
    weight_g = jax.random.uniform(k_wg, wshape, dtype, -w_bound, w_bound)
    weight_b = jax.random.uniform(k_wb, wshape, dtype, -w_bound, w_bound)
    bias_r = jax.random.uniform(k_br, (out_features,), dtype, -b_bound, b_bound)
    bias_g = jax.random.uniform(k_bg, (out_features,), dtype, -b_bound, b_bound)
    bias_b = jax.random.uniform(k_bb, (out_features,), dtype, -b_bound, b_bound)
    return weight_r, weight_g, weight_b, bias_r, bias_g, bias_b


def _reference(x, wr, wg, wb, br, bg, bb):
    y1 = x @ wr.T + br
    y2 = x @ wg.T + bg
    y3 = (x ** 2) @ wb.T + bb
    return y1 * y2 + y3


if __name__ == "__main__":
    key = jax.random.PRNGKey(0)
    k_x1, k_p1, k_x2, k_p2 = jax.random.split(key, 4)

    # Case 1: plain 2-D input, aligned sizes.
    batch, in_f, out_f = 128, 32, 32
    x1 = jax.random.normal(k_x1, (batch, in_f), dtype=jnp.float32)
    params1 = init_params(k_p1, in_f, out_f)
    prepped1 = prepare_params(*params1)          # one-time weight prep
    out1 = jax.block_until_ready(linear_quadratic(x1, prepped1))
    ref1 = _reference(x1, *params1)
    assert out1.shape == (batch, out_f)
    assert jnp.allclose(out1, ref1, atol=1e-4, rtol=1e-4), "case1 mismatch"

    # Case 2: extra leading dims + non-128-aligned features (exercises padding).
    in_f2, out_f2 = 40, 24
    x2 = jax.random.normal(k_x2, (2, 3, in_f2), dtype=jnp.float32)
    params2 = init_params(k_p2, in_f2, out_f2)
    prepped2 = prepare_params(*params2)
    out2 = jax.block_until_ready(linear_quadratic(x2, prepped2))
    ref2 = _reference(x2.reshape(-1, in_f2), *params2).reshape(2, 3, out_f2)
    assert out2.shape == (2, 3, out_f2)
    assert jnp.allclose(out2, ref2, atol=1e-4, rtol=1e-4), "case2 mismatch"

    print("KERNEL_OK")
</pallas_src>

<mosaic_0001>
module attributes {stable_mosaic.version = 11 : i64} {
  func.func @_quad_linear_kernel(%arg0: i32, %arg1: i32, %arg2: i32, %arg3: memref<64x128xf32, #tpu.memory_space<vmem>>, %arg4: memref<128x256xf32, #tpu.memory_space<vmem>>, %arg5: memref<128x128xf32, #tpu.memory_space<vmem>>, %arg6: memref<1x256xf32, #tpu.memory_space<vmem>>, %arg7: memref<1x128xf32, #tpu.memory_space<vmem>>, %arg8: memref<64x128xf32, #tpu.memory_space<vmem>>, %arg9: memref<64x256xf32, #tpu.memory_space<vmem>>, %arg10: memref<64x128xf32, #tpu.memory_space<vmem>>) attributes {dimension_semantics = [#tpu.dimension_semantics<parallel>, #tpu.dimension_semantics<parallel>, #tpu.dimension_semantics<arbitrary>], iteration_bounds = array<i64: 2, 1, 1>, scalar_prefetch = 0 : i64, scratch_operands = 2 : i64, tpu.core_type = #tpu.core_type<tc>, window_params = [{transform_indices = @transform_0, window_bounds = array<i64: 64, 128>}, {transform_indices = @transform_1, window_bounds = array<i64: 128, 256>}, {transform_indices = @transform_2, window_bounds = array<i64: 128, 128>}, {transform_indices = @transform_3, window_bounds = array<i64: 1, 256>}, {transform_indices = @transform_4, window_bounds = array<i64: 1, 128>}, {transform_indices = @transform_5, window_bounds = array<i64: 64, 128>}]} {
    %c0_i32 = arith.constant 0 : i32
    %0 = arith.cmpi eq, %arg2, %c0_i32 : i32
    %1 = arith.extui %0 : i1 to i32
    %c0_i32_0 = arith.constant 0 : i32
    %2 = arith.cmpi ne, %1, %c0_i32_0 : i32
    scf.if %2 {
      %c0_17 = arith.constant 0 : index
      %c0_18 = arith.constant 0 : index
      %18 = vector.load %arg6[%c0_17, %c0_18] : memref<1x256xf32, #tpu.memory_space<vmem>>, vector<1x256xf32>
      %19 = vector.shape_cast %18 : vector<1x256xf32> to vector<1x256xf32>
      %20 = vector.broadcast %19 : vector<1x256xf32> to vector<64x256xf32>
      %c0_19 = arith.constant 0 : index
      %c0_20 = arith.constant 0 : index
      %21 = vector.load %arg9[%c0_19, %c0_20] : memref<64x256xf32, #tpu.memory_space<vmem>>, vector<64x256xf32>
      tpu.vector_store %arg9[%c0_19, %c0_20], %20 {strides = array<i32>} : memref<64x256xf32, #tpu.memory_space<vmem>>, vector<64x256xf32>,
      %c0_21 = arith.constant 0 : index
      %c0_22 = arith.constant 0 : index
      %22 = vector.load %arg7[%c0_21, %c0_22] : memref<1x128xf32, #tpu.memory_space<vmem>>, vector<1x128xf32>
      %23 = vector.shape_cast %22 : vector<1x128xf32> to vector<1x128xf32>
      %24 = vector.broadcast %23 : vector<1x128xf32> to vector<64x128xf32>
      %c0_23 = arith.constant 0 : index
      %c0_24 = arith.constant 0 : index
      %25 = vector.load %arg10[%c0_23, %c0_24] : memref<64x128xf32, #tpu.memory_space<vmem>>, vector<64x128xf32>
      tpu.vector_store %arg10[%c0_23, %c0_24], %24 {strides = array<i32>} : memref<64x128xf32, #tpu.memory_space<vmem>>, vector<64x128xf32>,
    } else {
    }
    %c0 = arith.constant 0 : index
    %c0_1 = arith.constant 0 : index
    %3 = vector.load %arg3[%c0, %c0_1] : memref<64x128xf32, #tpu.memory_space<vmem>>, vector<64x128xf32>
    %c0_2 = arith.constant 0 : index
    %c0_3 = arith.constant 0 : index
    %4 = vector.load %arg9[%c0_2, %c0_3] : memref<64x256xf32, #tpu.memory_space<vmem>>, vector<64x256xf32>
    %c0_4 = arith.constant 0 : index
    %c0_5 = arith.constant 0 : index
    %5 = vector.load %arg4[%c0_4, %c0_5] : memref<128x256xf32, #tpu.memory_space<vmem>>, vector<128x256xf32>
    %cst = arith.constant dense<0.000000e+00> : vector<64x256xf32>
    %6 = tpu.matmul %3, %5, %cst {dimension_numbers = #tpu.dot_dimension_numbers<[1], [0], [0], [1], [0, 0, 1, 1], [], []>} : vector<64x128xf32>, vector<128x256xf32>, vector<64x256xf32> -> vector<64x256xf32>
    %7 = arith.addf %4, %6 : vector<64x256xf32>
    %c0_6 = arith.constant 0 : index
    %c0_7 = arith.constant 0 : index
    %8 = vector.load %arg9[%c0_6, %c0_7] : memref<64x256xf32, #tpu.memory_space<vmem>>, vector<64x256xf32>
    tpu.vector_store %arg9[%c0_6, %c0_7], %7 {strides = array<i32>} : memref<64x256xf32, #tpu.memory_space<vmem>>, vector<64x256xf32>,
    %c0_8 = arith.constant 0 : index
    %c0_9 = arith.constant 0 : index
    %9 = vector.load %arg10[%c0_8, %c0_9] : memref<64x128xf32, #tpu.memory_space<vmem>>, vector<64x128xf32>
    %10 = arith.mulf %3, %3 : vector<64x128xf32>
    %c0_10 = arith.constant 0 : index
    %c0_11 = arith.constant 0 : index
    %11 = vector.load %arg5[%c0_10, %c0_11] : memref<128x128xf32, #tpu.memory_space<vmem>>, vector<128x128xf32>
    %cst_12 = arith.constant dense<0.000000e+00> : vector<64x128xf32>
    %12 = tpu.matmul %10, %11, %cst_12 {dimension_numbers = #tpu.dot_dimension_numbers<[1], [0], [0], [1], [0, 0, 1, 1], [], []>} : vector<64x128xf32>, vector<128x128xf32>, vector<64x128xf32> -> vector<64x128xf32>
    %13 = arith.addf %9, %12 : vector<64x128xf32>
    %c0_13 = arith.constant 0 : index
    %c0_14 = arith.constant 0 : index
    %14 = vector.load %arg10[%c0_13, %c0_14] : memref<64x128xf32, #tpu.memory_space<vmem>>, vector<64x128xf32>
    tpu.vector_store %arg10[%c0_13, %c0_14], %13 {strides = array<i32>} : memref<64x128xf32, #tpu.memory_space<vmem>>, vector<64x128xf32>,
    %c0_i32_15 = arith.constant 0 : i32
    %15 = arith.cmpi eq, %arg2, %c0_i32_15 : i32
    %16 = arith.extui %15 : i1 to i32
    %c0_i32_16 = arith.constant 0 : i32
    %17 = arith.cmpi ne, %16, %c0_i32_16 : i32
    scf.if %17 {
      %c0_17 = arith.constant 0 : index
      %c0_18 = arith.constant 0 : index
      %18 = vector.load %arg9[%c0_17, %c0_18] : memref<64x256xf32, #tpu.memory_space<vmem>>, vector<64x128xf32>
      %c0_19 = arith.constant 0 : index
      %c128 = arith.constant 128 : index
      %19 = vector.load %arg9[%c0_19, %c128] : memref<64x256xf32, #tpu.memory_space<vmem>>, vector<64x128xf32>
      %20 = arith.mulf %18, %19 : vector<64x128xf32>
      %c0_20 = arith.constant 0 : index
      %c0_21 = arith.constant 0 : index
      %21 = vector.load %arg10[%c0_20, %c0_21] : memref<64x128xf32, #tpu.memory_space<vmem>>, vector<64x128xf32>
      %22 = arith.addf %20, %21 : vector<64x128xf32>
      %c0_22 = arith.constant 0 : index
      %c0_23 = arith.constant 0 : index
      %23 = vector.load %arg8[%c0_22, %c0_23] : memref<64x128xf32, #tpu.memory_space<vmem>>, vector<64x128xf32>
      tpu.vector_store %arg8[%c0_22, %c0_23], %22 {strides = array<i32>} : memref<64x128xf32, #tpu.memory_space<vmem>>, vector<64x128xf32>,
    } else {
    }
    return
  }
  func.func @transform_0(%arg0: i32, %arg1: i32, %arg2: i32) -> (i32, i32) {
    %c0_i32 = arith.constant 0 : i32
    return %arg0, %arg2 : i32, i32
  }
  func.func @transform_1(%arg0: i32, %arg1: i32, %arg2: i32) -> (i32, i32) {
    %c0_i32 = arith.constant 0 : i32
    return %arg2, %arg1 : i32, i32
  }
  func.func @transform_2(%arg0: i32, %arg1: i32, %arg2: i32) -> (i32, i32) {
    %c0_i32 = arith.constant 0 : i32
    return %arg2, %arg1 : i32, i32
  }
  func.func @transform_3(%arg0: i32, %arg1: i32, %arg2: i32) -> (i32, i32) {
    %c0_i32 = arith.constant 0 : i32
    %c0_i32_0 = arith.constant 0 : i32
    return %c0_i32, %arg1 : i32, i32
  }
  func.func @transform_4(%arg0: i32, %arg1: i32, %arg2: i32) -> (i32, i32) {
    %c0_i32 = arith.constant 0 : i32
    %c0_i32_0 = arith.constant 0 : i32
    return %c0_i32, %arg1 : i32, i32
  }
  func.func @transform_5(%arg0: i32, %arg1: i32, %arg2: i32) -> (i32, i32) {
    %c0_i32 = arith.constant 0 : i32
    return %arg0, %arg1 : i32, i32
  }
}

</mosaic_0001>

<llo_original>
// kernel: tpu_custom_call.1
$region0: #{tpu_custom_call.1}
  #allocation0 [shape = 'u32[]', space=smem, size = 0x4, offset = 0x4, fixed_abs, tag = 'smem constant byte address 0x4 - core index']
  #allocation1 [shape = 'u32[72,128]{1,0:T(1,128)}', space=vmem, size = 0x9000, scoped, tag = 'internal scratch']
  #allocation2 [shape = 'f32[64,256]{1,0:T(8,128)}', space=vmem, size = 0x10000, scoped, tag = 'scratch operand']
  #allocation3 [shape = 'f32[64,128]{1,0:T(8,128)}', space=vmem, size = 0x8000, scoped, tag = 'scratch operand']
  %s0 = inlined_call_operand.hbm [shape: f32[128,128], index: 0, kind: input, shape index: {}]
  %s1 = inlined_call_operand.hbm [shape: f32[128,256], index: 1, kind: input, shape index: {}]
  %s2 = inlined_call_operand.hbm [shape: f32[128,128], index: 2, kind: input, shape index: {}]
  %s3 = inlined_call_operand.vmem [shape: f32[1,256], index: 3, kind: input, shape index: {}]
  %s4 = inlined_call_operand.vmem [shape: f32[1,128], index: 4, kind: input, shape index: {}]
  %s5 = inlined_call_operand.hbm [shape: f32[128,128], index: 5, kind: output, shape index: {}]
  %s6 = sld [smem:[#allocation0]]
  $region73: #{tpu_custom_call.1} parent=0
    _
  %s8 = ssub.s32 1, %s6
  %s9 = scalar_select 0, %s8, %s6
  $region1: #{tpu_custom_call.1} parent=0
    #allocation4 [shape = 'u8[65536]{0}', space=vmem, size = 0x10000, scoped, tag = 'input window, operand 0']
    #allocation5 [shape = 's32[2]{0}', space=sflag, size = 0x8, scoped, tag = 'scoped memory for tpu_custom_call.1']
    #allocation6 [shape = 's32[2]{0}', space=sflag, size = 0x8, scoped, tag = 'scoped memory for tpu_custom_call.1']
    #allocation7 [shape = 'u8[131072]{0}', space=vmem, size = 0x20000, scoped, tag = 'input window, operand 1, single buffered']
    #allocation8 [shape = 's32[1]{0}', space=sflag, size = 0x4, scoped, tag = 'scoped memory for tpu_custom_call.1']
    #allocation9 [shape = 'u8[65536]{0}', space=vmem, size = 0x10000, scoped, tag = 'input window, operand 2, single buffered']
    #allocation10 [shape = 'u8[65536]{0}', space=vmem, size = 0x10000, scoped, tag = 'output window, operand 0']
    %10 = vsyncpa [#allocation5], 0
    %s11 = scalar_lea.sflag [#allocation5], 1
    %12 = vsyncpa %s11, 0
    %13 = vsyncpa [#allocation8], 0
    %14 = vsyncpa [#allocation6], 0
    %s15 = scalar_lea.sflag [#allocation6], 1
    %16 = vsyncpa %s15, 0
    loop: start=0, step=1, limit=4
    $region2: #{tpu_custom_call.1} parent=1 // loop_pre_header
      _
    $region3: #{tpu_custom_call.1} parent=1 // loop_header
      %s18 = sphi 0, %s22
      %p19 = scmp.ge.s32.totalorder %s18, 4
      %s25 = sphi 0, %s44
      %s26 = sphi 0, %s40
      %s27 = sphi 0, %s36
      %s28 = sphi 0, %s25
      %s29 = sphi 0, %s26
      %s30 = sphi 0, %s27
      %s31 = sphi 0, %s28
      %s32 = sphi 0, %s29
      %s33 = sphi 0, %s30
      %s49 = sphi 0, %s51
      %s52 = sphi 0, %s49
      %s53 = sphi 0, %s52
      %s69 = sphi 0, %s53
      %s77 = sphi 0, %s79
      %s80 = sphi 0, %s77
      %s81 = sphi 0, %s80
      %s97 = sphi 0, %s81
      %s105 = sphi 0, %s107
      %s108 = sphi 0, %s105
      %s109 = sphi 0, %s108
      %s125 = sphi 0, %s109
      %s131 = sphi 0, %s133
      %s134 = sphi 0, %s131
      %s135 = sphi 0, %s134
      %s151 = sphi 0, %s135
      %s157 = sphi 0, %s159
      %s160 = sphi 0, %s157
      %s161 = sphi 0, %s160
      %s177 = sphi 0, %s161
      %s185 = sphi 0, %s187
      %s188 = sphi 0, %s185
      %s189 = sphi 0, %s188
      %s205 = sphi 0, %s189
    $region4: #{tpu_custom_call.1} parent=1 // loop_header_branch
      %21 = sbr.rel (%p19) target = $region8
    $region5: #{tpu_custom_call.1} parent=1 // loop_body
      %s23 = ssub.s32 %s18, 1
      %s24 = ssub.s32 %s18, 2
      %s34 = sadd.s32 1, %s27
      %p35 = scmp.ge.s32.totalorder %s34, 1
      %s36 = scalar_select %p35, 0, %s34
      %s37 = sadd.s32 1, %s26
      %s38 = scalar_select %p35, %s37, %s26
      %p39 = scmp.ge.s32.totalorder %s38, 1
      %s40 = scalar_select %p39, 0, %s38
      %s41 = sadd.s32 1, %s25
      %s42 = scalar_select %p39, %s41, %s25
      %p43 = scmp.ge.s32.totalorder %s42, 2
      %s44 = scalar_select %p43, 0, %s42
      %s45 = ssub.s32 %s25, %s44
      %s46 = ssub.s32 %s27, %s36
      %s47 = sor.u32 %s45, %s46
      %p48 = scmp.eq.s32.totalorder %s47, 0
      %s50 = sadd.s32 %s49, 1
      %s51 = scalar_select %p48, %s49, %s50
      %p54 = pneg %p48
      %p55 = scmp.eq.s32.totalorder %s18, 1
      %p56 = por %p54, %p55
      %p57 = scmp.ne.s32.totalorder %s49, %s52
      %p58 = scmp.eq.s32.totalorder %s18, 0
      %p59 = por %p57, %p58
      %p60 = scmp.ne.s32.totalorder %s49, %s52
      %p61 = scmp.eq.s32.totalorder %s23, 1
      %p62 = por %p60, %p61
      %p63 = scmp.ne.s32.totalorder %s52, %s53
      %p64 = scmp.eq.s32.totalorder %s23, 0
      %p65 = por %p63, %p64
      %p66 = scmp.ne.s32.totalorder %s52, %s53
      %p67 = scmp.eq.s32.totalorder %s24, 1
      %p68 = por %p66, %p67
      %p70 = scmp.ne.s32.totalorder %s53, %s69
      %p71 = scmp.eq.s32.totalorder %s24, 0
      %p72 = por %p70, %p71
      %s73 = ssub.s32 %s27, %s36
      %s74 = ssub.s32 %s26, %s40
      %s75 = sor.u32 %s73, %s74
      %p76 = scmp.eq.s32.totalorder %s75, 0
      %s78 = sadd.s32 %s77, 1
      %s79 = scalar_select %p76, %s77, %s78
      %p82 = pneg %p76
      %p83 = scmp.eq.s32.totalorder %s18, 1
      %p84 = por %p82, %p83
      %p85 = scmp.ne.s32.totalorder %s77, %s80
      %p86 = scmp.eq.s32.totalorder %s18, 0
      %p87 = por %p85, %p86
      %p88 = scmp.ne.s32.totalorder %s77, %s80
      %p89 = scmp.eq.s32.totalorder %s23, 1
      %p90 = por %p88, %p89
      %p91 = scmp.ne.s32.totalorder %s80, %s81
      %p92 = scmp.eq.s32.totalorder %s23, 0
      %p93 = por %p91, %p92
      %p94 = scmp.ne.s32.totalorder %s80, %s81
      %p95 = scmp.eq.s32.totalorder %s24, 1
      %p96 = por %p94, %p95
      %p98 = scmp.ne.s32.totalorder %s81, %s97
      %p99 = scmp.eq.s32.totalorder %s24, 0
      %p100 = por %p98, %p99
      %s101 = ssub.s32 %s27, %s36
      %s102 = ssub.s32 %s26, %s40
      %s103 = sor.u32 %s101, %s102
      %p104 = scmp.eq.s32.totalorder %s103, 0
      %s106 = sadd.s32 %s105, 1
      %s107 = scalar_select %p104, %s105, %s106
      %p110 = pneg %p104
      %p111 = scmp.eq.s32.totalorder %s18, 1
      %p112 = por %p110, %p111
      %p113 = scmp.ne.s32.totalorder %s105, %s108
      %p114 = scmp.eq.s32.totalorder %s18, 0
      %p115 = por %p113, %p114
      %p116 = scmp.ne.s32.totalorder %s105, %s108
      %p117 = scmp.eq.s32.totalorder %s23, 1
      %p118 = por %p116, %p117
      %p119 = scmp.ne.s32.totalorder %s108, %s109
      %p120 = scmp.eq.s32.totalorder %s23, 0
      %p121 = por %p119, %p120
      %p122 = scmp.ne.s32.totalorder %s108, %s109
      %p123 = scmp.eq.s32.totalorder %s24, 1
      %p124 = por %p122, %p123
      %p126 = scmp.ne.s32.totalorder %s109, %s125
      %p127 = scmp.eq.s32.totalorder %s24, 0
      %p128 = por %p126, %p127
      %s129 = ssub.s32 %s26, %s40
      %p130 = scmp.eq.s32.totalorder %s129, 0
      %s132 = sadd.s32 %s131, 1
      %s133 = scalar_select %p130, %s131, %s132
      %p136 = pneg %p130
      %p137 = scmp.eq.s32.totalorder %s18, 1
      %p138 = por %p136, %p137
      %p139 = scmp.ne.s32.totalorder %s131, %s134
      %p140 = scmp.eq.s32.totalorder %s18, 0
      %p141 = por %p139, %p140
      %p142 = scmp.ne.s32.totalorder %s131, %s134
      %p143 = scmp.eq.s32.totalorder %s23, 1
      %p144 = por %p142, %p143
      %p145 = scmp.ne.s32.totalorder %s134, %s135
      %p146 = scmp.eq.s32.totalorder %s23, 0
      %p147 = por %p145, %p146
      %p148 = scmp.ne.s32.totalorder %s134, %s135
      %p149 = scmp.eq.s32.totalorder %s24, 1
      %p150 = por %p148, %p149
      %p152 = scmp.ne.s32.totalorder %s135, %s151
      %p153 = scmp.eq.s32.totalorder %s24, 0
      %p154 = por %p152, %p153
      %s155 = ssub.s32 %s26, %s40
      %p156 = scmp.eq.s32.totalorder %s155, 0
      %s158 = sadd.s32 %s157, 1
      %s159 = scalar_select %p156, %s157, %s158
      %p162 = pneg %p156
      %p163 = scmp.eq.s32.totalorder %s18, 1
      %p164 = por %p162, %p163
      %p165 = scmp.ne.s32.totalorder %s157, %s160
      %p166 = scmp.eq.s32.totalorder %s18, 0
      %p167 = por %p165, %p166
      %p168 = scmp.ne.s32.totalorder %s157, %s160
      %p169 = scmp.eq.s32.totalorder %s23, 1
      %p170 = por %p168, %p169
      %p171 = scmp.ne.s32.totalorder %s160, %s161
      %p172 = scmp.eq.s32.totalorder %s23, 0
      %p173 = por %p171, %p172
      %p174 = scmp.ne.s32.totalorder %s160, %s161
      %p175 = scmp.eq.s32.totalorder %s24, 1
      %p176 = por %p174, %p175
      %p178 = scmp.ne.s32.totalorder %s161, %s177
      %p179 = scmp.eq.s32.totalorder %s24, 0
      %p180 = por %p178, %p179
      %s181 = ssub.s32 %s25, %s44
      %s182 = ssub.s32 %s26, %s40
      %s183 = sor.u32 %s181, %s182
      %p184 = scmp.eq.s32.totalorder %s183, 0
      %s186 = sadd.s32 %s185, 1
      %s187 = scalar_select %p184, %s185, %s186
      %p190 = pneg %p184
      %p191 = scmp.eq.s32.totalorder %s18, 1
      %p192 = por %p190, %p191
      %p193 = scmp.ne.s32.totalorder %s185, %s188
      %p194 = scmp.eq.s32.totalorder %s18, 0
      %p195 = por %p193, %p194
      %p196 = scmp.ne.s32.totalorder %s185, %s188
      %p197 = scmp.eq.s32.totalorder %s23, 1
      %p198 = por %p196, %p197
      %p199 = scmp.ne.s32.totalorder %s188, %s189
      %p200 = scmp.eq.s32.totalorder %s23, 0
      %p201 = por %p199, %p200
      %p202 = scmp.ne.s32.totalorder %s188, %s189
      %p203 = scmp.eq.s32.totalorder %s24, 1
      %p204 = por %p202, %p203
      %p206 = scmp.ne.s32.totalorder %s189, %s205
      %p207 = scmp.eq.s32.totalorder %s24, 0
      %p208 = por %p206, %p207
      %p209 = scmp.le.s32.totalorder 1, %s18
      %p210 = scmp.lt.s32.totalorder %s18, 3
      %p211 = pnand %p209, %p210
      %p212 = pneg %p211
      // Predicated region
      $region9: #{tpu_custom_call.1} parent=5 // pred_check
        _
      $region10: #{tpu_custom_call.1} parent=5 // pred_check_branch
        %214 = sbr.rel (%p211) target = $region12
      $region11: #{tpu_custom_call.1} parent=5 // pred_region
        %s215 = ssub.s32 %s18, 1
        // Predicated region
        $region13: #{tpu_custom_call.1} parent=11 // pred_check
          %p216 = pneg %p93
        $region14: #{tpu_custom_call.1} parent=11 // pred_check_branch
          %218 = sbr.rel (%p216) target = $region16
        $region15: #{tpu_custom_call.1} parent=11 // pred_region
          %s219 = smul.u32 16, %s30
          %s220 = smul.u32 2, %s29
          %222 = vsyncadd [#allocation8], 0
          %s223 = smul.addr %s219, 2
          %s224 = sadd.s32 %s220, %s223
          %s225 = smul.addr %s224, 8
          %s226 = scalar_lea.hbm %s1, %s225
          %s227 = sshll.u32 %s226, 4
          %s228 = int_to_ptr.hbm [resolvable:$true] %s227
          %s229 = sshll.u32 [#allocation7], 4
          %s230 = int_to_ptr.vmem [resolvable:$true] %s229
          %235 = dma.hbm_to_vmem [thread:$0]  %s228, 4096, %s230, [#allocation8], 256, 256, 16
        $region16: #{tpu_custom_call.1} parent=11 // pred_fallthru
          _
        // Predicated region
        $region17: #{tpu_custom_call.1} parent=11 // pred_check
          %p236 = pneg %p121
        $region18: #{tpu_custom_call.1} parent=11 // pred_check_branch
          %238 = sbr.rel (%p236) target = $region20
        $region19: #{tpu_custom_call.1} parent=11 // pred_region
          %s239 = smul.u32 16, %s30
          %241 = vsyncadd [#allocation8], 0
          %s242 = sadd.s32 %s29, %s239
          %s243 = smul.addr %s242, 8
          %s244 = scalar_lea.hbm %s2, %s243
          %s245 = sshll.u32 %s244, 4
          %s246 = int_to_ptr.hbm [resolvable:$true] %s245
          %s247 = sshll.u32 [#allocation9], 4
          %s248 = int_to_ptr.vmem [resolvable:$true] %s247
          %253 = dma.hbm_to_vmem [thread:$0]  %s246, 2048, %s248, [#allocation8], 128, 128, 8
        $region20: #{tpu_custom_call.1} parent=11 // pred_fallthru
          _
        // Predicated region
        $region21: #{tpu_custom_call.1} parent=11 // pred_check
          %p254 = pneg %p147
        $region22: #{tpu_custom_call.1} parent=11 // pred_check_branch
          %256 = sbr.rel (%p254) target = $region24
        $region23: #{tpu_custom_call.1} parent=11 // pred_region
          %s257 = smul.u32 2, %s29
          %p258 = scmp.lt.s32.totalorder %s257, 1
          %s259 = scalar_select %p258, %s257, 1
          %s260 = scalar_lea.vmem %s3, %s259
          %s261 = smul.u32 2, %s29
        $region24: #{tpu_custom_call.1} parent=11 // pred_fallthru
          _
        // Predicated region
        $region25: #{tpu_custom_call.1} parent=11 // pred_check
          %p262 = pneg %p173
        $region26: #{tpu_custom_call.1} parent=11 // pred_check_branch
          %264 = sbr.rel (%p262) target = $region28
        $region27: #{tpu_custom_call.1} parent=11 // pred_region
          %p265 = scmp.lt.s32.totalorder %s29, 0
          %s266 = scalar_select %p265, %s29, 0
          %s267 = scalar_lea.vmem %s4, %s266
        $region28: #{tpu_custom_call.1} parent=11 // pred_fallthru
          _
      $region12: #{tpu_custom_call.1} parent=5 // pred_fallthru
        _
      %p268 = scmp.lt.s32.totalorder %s18, 2
      // Predicated region
      $region29: #{tpu_custom_call.1} parent=5 // pred_check
        %p269 = pneg %p268
      $region30: #{tpu_custom_call.1} parent=5 // pred_check_branch
        %271 = sbr.rel (%p269) target = $region32
      $region31: #{tpu_custom_call.1} parent=5 // pred_region
        // Predicated region
        $region33: #{tpu_custom_call.1} parent=31 // pred_check
          %p272 = pneg %p59
        $region34: #{tpu_custom_call.1} parent=31 // pred_check_branch
          %274 = sbr.rel (%p272) target = $region36
        $region35: #{tpu_custom_call.1} parent=31 // pred_region
          %s275 = sand.u32 %s49, 1
          %s276 = scalar_lea.sflag [#allocation5], %s275
          %s277 = sand.u32 %s49, 1
          %s278 = smul.addr %s277, 64
          %s279 = scalar_lea.vmem [#allocation4], %s278
          %s280 = smul.u32 8, %s25
          %282 = vsyncadd %s276, 0
          %s283 = sadd.s32 %s27, %s280
          %s284 = smul.addr %s283, 8
          %s285 = scalar_lea.hbm %s0, %s284
          %s286 = sshll.u32 %s285, 4
          %s287 = int_to_ptr.hbm [resolvable:$true] %s286
          %s288 = sshll.u32 %s279, 4
          %s289 = int_to_ptr.vmem [resolvable:$true] %s288
          %294 = dma.hbm_to_vmem [thread:$0]  %s287, 1024, %s289, %s276, 128, 128, 8
        $region36: #{tpu_custom_call.1} parent=31 // pred_fallthru
          _
      $region32: #{tpu_custom_call.1} parent=5 // pred_fallthru
        _
      %p295 = scmp.le.s32.totalorder 1, %s18
      %p296 = scmp.lt.s32.totalorder %s18, 3
      %p297 = pnand %p295, %p296
      %p298 = pneg %p297
      // Predicated region
      $region37: #{tpu_custom_call.1} parent=5 // pred_check
        _
      $region38: #{tpu_custom_call.1} parent=5 // pred_check_branch
        %300 = sbr.rel (%p297) target = $region40
      $region39: #{tpu_custom_call.1} parent=5 // pred_region
        %s301 = ssub.s32 %s18, 1
        %s302 = sand.u32 %s52, 1
        %s303 = scalar_lea.sflag [#allocation5], %s302
        %s304 = sand.u32 %s52, 1
        %s305 = smul.addr %s304, 64
        %s306 = scalar_lea.vmem [#allocation4], %s305
        // Predicated region
        $region41: #{tpu_custom_call.1} parent=39 // pred_check
          %p307 = pneg %p65
        $region42: #{tpu_custom_call.1} parent=39 // pred_check_branch
          %309 = sbr.rel (%p307) target = $region44
        $region43: #{tpu_custom_call.1} parent=39 // pred_region
          %311 = dma.done %s303, 1024
        $region44: #{tpu_custom_call.1} parent=39 // pred_fallthru
          _
        // Predicated region
        $region45: #{tpu_custom_call.1} parent=39 // pred_check
          %p312 = pneg %p93
        $region46: #{tpu_custom_call.1} parent=39 // pred_check_branch
          %314 = sbr.rel (%p312) target = $region48
        $region47: #{tpu_custom_call.1} parent=39 // pred_region
          %316 = dma.done [#allocation8], 4096
        $region48: #{tpu_custom_call.1} parent=39 // pred_fallthru
          _
        // Predicated region
        $region49: #{tpu_custom_call.1} parent=39 // pred_check
          %p317 = pneg %p121
        $region50: #{tpu_custom_call.1} parent=39 // pred_check_branch
          %319 = sbr.rel (%p317) target = $region52
        $region51: #{tpu_custom_call.1} parent=39 // pred_region
          %321 = dma.done [#allocation8], 2048
        $region52: #{tpu_custom_call.1} parent=39 // pred_fallthru
          _
        %s322 = sand.u32 %s52, 1
        %s323 = scalar_lea.sflag [#allocation5], %s322
        %s324 = sand.u32 %s52, 1
        %s325 = smul.addr %s324, 64
        %s326 = scalar_lea.vmem [#allocation4], %s325
        %p327 = pneg %p65
        %p328 = pneg %p62
        %p329 = pneg %p93
        %p330 = pneg %p90
        %p331 = pneg %p121
        %p332 = pneg %p118
        %s333 = smul.u32 2, %s29
        %p334 = scmp.lt.s32.totalorder %s333, 1
        %s335 = scalar_select %p334, %s333, 1
        %s336 = scalar_lea.vmem %s3, %s335
        %p337 = pneg %p147
        %p338 = pneg %p144
        %p339 = scmp.lt.s32.totalorder %s29, 0
        %s340 = scalar_select %p339, %s29, 0
        %s341 = scalar_lea.vmem %s4, %s340
        %p342 = pneg %p173
        %p343 = pneg %p170
        %p344 = pneg %p201
        %p345 = pneg %p198
        %s346 = sand.u32 %s188, 1
        %s347 = scalar_lea.sflag [#allocation6], %s346
        %s348 = sand.u32 %s188, 1
        %s349 = smul.addr %s348, 64
        %s350 = scalar_lea.vmem [#allocation10], %s349
        %s351 = smul.u32 8, %s28
        %s352 = smul.u32 16, %s30
        %s353 = smul.u32 2, %s29
        %s354 = smul.u32 16, %s30
        %s355 = smul.u32 2, %s29
        %p356 = scmp.lt.s32.totalorder %s355, 1
        %s357 = scalar_select %p356, %s355, 1
        %s358 = scalar_lea.vmem %s3, %s357
        %s359 = smul.u32 2, %s29
        %p360 = scmp.lt.s32.totalorder %s29, 0
        %s361 = scalar_select %p360, %s29, 0
        %s362 = scalar_lea.vmem %s4, %s361
        %s363 = smul.u32 8, %s28
        %p364 = scmp.eq.s32.totalorder %s30, 0
        // Predicated region
        $region53: #{tpu_custom_call.1} parent=39 // pred_check
          %p365 = pneg %p364
        $region54: #{tpu_custom_call.1} parent=39 // pred_check_branch
          %367 = sbr.rel (%p365) target = $region56
        $region55: #{tpu_custom_call.1} parent=39 // pred_region
          %v368 = vld [vmem:[%s358] sm:$0x3]
          %v370 = vperm.slane %v368, 0
          %v371 = vperm.slane %v368, 1
          %374 = vst [vmem:[#allocation2] sm:$0xff] %v370
          %375 = vst [vmem:[#allocation2 + $0x8] sm:$0xff] %v371
          %376 = vst [vmem:[#allocation2 + $0x10] sm:$0xff] %v370
          %377 = vst [vmem:[#allocation2 + $0x18] sm:$0xff] %v371
          %378 = vst [vmem:[#allocation2 + $0x20] sm:$0xff] %v370
          %379 = vst [vmem:[#allocation2 + $0x28] sm:$0xff] %v371
          %380 = vst [vmem:[#allocation2 + $0x30] sm:$0xff] %v370
          %381 = vst [vmem:[#allocation2 + $0x38] sm:$0xff] %v371
          %382 = vst [vmem:[#allocation2 + $0x40] sm:$0xff] %v370
          %383 = vst [vmem:[#allocation2 + $0x48] sm:$0xff] %v371
          %384 = vst [vmem:[#allocation2 + $0x50] sm:$0xff] %v370
          %385 = vst [vmem:[#allocation2 + $0x58] sm:$0xff] %v371
          %386 = vst [vmem:[#allocation2 + $0x60] sm:$0xff] %v370
          %387 = vst [vmem:[#allocation2 + $0x68] sm:$0xff] %v371
          %388 = vst [vmem:[#allocation2 + $0x70] sm:$0xff] %v370
          %389 = vst [vmem:[#allocation2 + $0x78] sm:$0xff] %v371
          %v390 = vld [vmem:[%s362] sm:$0x1]
          %v392 = vperm.slane %v390, 0
          %394 = vst [vmem:[#allocation3] sm:$0xff] %v392
          %395 = vst [vmem:[#allocation3 + $0x8] sm:$0xff] %v392
          %396 = vst [vmem:[#allocation3 + $0x10] sm:$0xff] %v392
          %397 = vst [vmem:[#allocation3 + $0x18] sm:$0xff] %v392
          %398 = vst [vmem:[#allocation3 + $0x20] sm:$0xff] %v392
          %399 = vst [vmem:[#allocation3 + $0x28] sm:$0xff] %v392
          %400 = vst [vmem:[#allocation3 + $0x30] sm:$0xff] %v392
          %401 = vst [vmem:[#allocation3 + $0x38] sm:$0xff] %v392
        $region56: #{tpu_custom_call.1} parent=39 // pred_fallthru
          _
        %v402 = vld [vmem:[%s306] sm:$0xff]
        %v403 = vld [vmem:[%s306 + $0x8] sm:$0xff]
        %v404 = vld [vmem:[%s306 + $0x10] sm:$0xff]
        %v405 = vld [vmem:[%s306 + $0x18] sm:$0xff]
        %v406 = vld [vmem:[%s306 + $0x20] sm:$0xff]
        %v407 = vld [vmem:[%s306 + $0x28] sm:$0xff]
        %v408 = vld [vmem:[%s306 + $0x30] sm:$0xff]
        %v409 = vld [vmem:[%s306 + $0x38] sm:$0xff]
        %v410 = vld [vmem:[#allocation2] sm:$0xff]
        %v411 = vld [vmem:[#allocation2 + $0x8] sm:$0xff]
        %v412 = vld [vmem:[#allocation2 + $0x10] sm:$0xff]
        %v413 = vld [vmem:[#allocation2 + $0x18] sm:$0xff]
        %v414 = vld [vmem:[#allocation2 + $0x20] sm:$0xff]
        %v415 = vld [vmem:[#allocation2 + $0x28] sm:$0xff]
        %v416 = vld [vmem:[#allocation2 + $0x30] sm:$0xff]
        %v417 = vld [vmem:[#allocation2 + $0x38] sm:$0xff]
        %v418 = vld [vmem:[#allocation2 + $0x40] sm:$0xff]
        %v419 = vld [vmem:[#allocation2 + $0x48] sm:$0xff]
        %v420 = vld [vmem:[#allocation2 + $0x50] sm:$0xff]
        %v421 = vld [vmem:[#allocation2 + $0x58] sm:$0xff]
        %v422 = vld [vmem:[#allocation2 + $0x60] sm:$0xff]
        %v423 = vld [vmem:[#allocation2 + $0x68] sm:$0xff]
        %v424 = vld [vmem:[#allocation2 + $0x70] sm:$0xff]
        %v425 = vld [vmem:[#allocation2 + $0x78] sm:$0xff]
        %v426 = vld [vmem:[#allocation7] sm:$0xff]
        %v427 = vld [vmem:[#allocation7 + $0x8] sm:$0xff]
        %v428 = vld [vmem:[#allocation7 + $0x10] sm:$0xff]
        %v429 = vld [vmem:[#allocation7 + $0x18] sm:$0xff]
        %v430 = vld [vmem:[#allocation7 + $0x20] sm:$0xff]
        %v431 = vld [vmem:[#allocation7 + $0x28] sm:$0xff]
        %v432 = vld [vmem:[#allocation7 + $0x30] sm:$0xff]
        %v433 = vld [vmem:[#allocation7 + $0x38] sm:$0xff]
        %v434 = vld [vmem:[#allocation7 + $0x40] sm:$0xff]
        %v435 = vld [vmem:[#allocation7 + $0x48] sm:$0xff]
        %v436 = vld [vmem:[#allocation7 + $0x50] sm:$0xff]
        %v437 = vld [vmem:[#allocation7 + $0x58] sm:$0xff]
        %v438 = vld [vmem:[#allocation7 + $0x60] sm:$0xff]
        %v439 = vld [vmem:[#allocation7 + $0x68] sm:$0xff]
        %v440 = vld [vmem:[#allocation7 + $0x70] sm:$0xff]
        %v441 = vld [vmem:[#allocation7 + $0x78] sm:$0xff]
        %v442 = vld [vmem:[#allocation7 + $0x80] sm:$0xff]
        %v443 = vld [vmem:[#allocation7 + $0x88] sm:$0xff]
        %v444 = vld [vmem:[#allocation7 + $0x90] sm:$0xff]
        %v445 = vld [vmem:[#allocation7 + $0x98] sm:$0xff]
        %v446 = vld [vmem:[#allocation7 + $0xa0] sm:$0xff]
        %v447 = vld [vmem:[#allocation7 + $0xa8] sm:$0xff]
        %v448 = vld [vmem:[#allocation7 + $0xb0] sm:$0xff]
        %v449 = vld [vmem:[#allocation7 + $0xb8] sm:$0xff]
        %v450 = vld [vmem:[#allocation7 + $0xc0] sm:$0xff]
        %v451 = vld [vmem:[#allocation7 + $0xc8] sm:$0xff]
        %v452 = vld [vmem:[#allocation7 + $0xd0] sm:$0xff]
        %v453 = vld [vmem:[#allocation7 + $0xd8] sm:$0xff]
        %v454 = vld [vmem:[#allocation7 + $0xe0] sm:$0xff]
        %v455 = vld [vmem:[#allocation7 + $0xe8] sm:$0xff]
        %v456 = vld [vmem:[#allocation7 + $0xf0] sm:$0xff]
        %v457 = vld [vmem:[#allocation7 + $0xf8] sm:$0xff]
        %458 = vmatpush.msra.mxu0 %v456
        %459 = vmatpush.msra.mxu0 %v454
        %460 = vmatpush.msra.mxu0 %v452
        %461 = vmatpush.msra.mxu0 %v450
        %462 = vmatpush.msra.mxu0 %v448
        %463 = vmatpush.msra.mxu0 %v446
        %464 = vmatpush.msra.mxu0 %v444
        %465 = vmatpush.msra.mxu0 %v442
        %466 = vmatpush.msra.mxu0 %v440
        %467 = vmatpush.msra.mxu0 %v438
        %468 = vmatpush.msra.mxu0 %v436
        %469 = vmatpush.msra.mxu0 %v434
        %470 = vmatpush.msra.mxu0 %v432
        %471 = vmatpush.msra.mxu0 %v430
        %472 = vmatpush.msra.mxu0 %v428
        %473 = vmatpush.msra.mxu0 %v426
        %474 = vmatmul.f32.gmra.mxu0 %v402
        %v475 = vpop.f32.mrf.mxu0
        %v476 = vadd.f32 0.0, %v475
        %477 = vmatmul.f32.gmra.mxu0 %v403
        %v478 = vpop.f32.mrf.mxu0
        %v479 = vadd.f32 0.0, %v478
        %480 = vmatmul.f32.gmra.mxu0 %v404
        %v481 = vpop.f32.mrf.mxu0
        %v482 = vadd.f32 0.0, %v481
        %483 = vmatmul.f32.gmra.mxu0 %v405
        %v484 = vpop.f32.mrf.mxu0
        %v485 = vadd.f32 0.0, %v484
        %486 = vmatmul.f32.gmra.mxu0 %v406
        %v487 = vpop.f32.mrf.mxu0
        %v488 = vadd.f32 0.0, %v487
        %489 = vmatmul.f32.gmra.mxu0 %v407
        %v490 = vpop.f32.mrf.mxu0
        %v491 = vadd.f32 0.0, %v490
        %492 = vmatmul.f32.gmra.mxu0 %v408
        %v493 = vpop.f32.mrf.mxu0
        %v494 = vadd.f32 0.0, %v493
        %495 = vmatmul.f32.gmra.mxu0 %v409
        %v496 = vpop.f32.mrf.mxu0
        %v497 = vadd.f32 0.0, %v496
        %498 = vdwg.mxu0
        %499 = vmatpush.msra.mxu0 %v457
        %500 = vmatpush.msra.mxu0 %v455
        %501 = vmatpush.msra.mxu0 %v453
        %502 = vmatpush.msra.mxu0 %v451
        %503 = vmatpush.msra.mxu0 %v449
        %504 = vmatpush.msra.mxu0 %v447
        %505 = vmatpush.msra.mxu0 %v445
        %506 = vmatpush.msra.mxu0 %v443
        %507 = vmatpush.msra.mxu0 %v441
        %508 = vmatpush.msra.mxu0 %v439
        %509 = vmatpush.msra.mxu0 %v437
        %510 = vmatpush.msra.mxu0 %v435
        %511 = vmatpush.msra.mxu0 %v433
        %512 = vmatpush.msra.mxu0 %v431
        %513 = vmatpush.msra.mxu0 %v429
        %514 = vmatpush.msra.mxu0 %v427
        %515 = vmatmul.f32.gmra.mxu0 %v402
        %v516 = vpop.f32.mrf.mxu0
        %v517 = vadd.f32 0.0, %v516
        %518 = vmatmul.f32.gmra.mxu0 %v403
        %v519 = vpop.f32.mrf.mxu0
        %v520 = vadd.f32 0.0, %v519
        %521 = vmatmul.f32.gmra.mxu0 %v404
        %v522 = vpop.f32.mrf.mxu0
        %v523 = vadd.f32 0.0, %v522
        %524 = vmatmul.f32.gmra.mxu0 %v405
        %v525 = vpop.f32.mrf.mxu0
        %v526 = vadd.f32 0.0, %v525
        %527 = vmatmul.f32.gmra.mxu0 %v406
        %v528 = vpop.f32.mrf.mxu0
        %v529 = vadd.f32 0.0, %v528
        %530 = vmatmul.f32.gmra.mxu0 %v407
        %v531 = vpop.f32.mrf.mxu0
        %v532 = vadd.f32 0.0, %v531
        %533 = vmatmul.f32.gmra.mxu0 %v408
        %v534 = vpop.f32.mrf.mxu0
        %v535 = vadd.f32 0.0, %v534
        %536 = vmatmul.f32.gmra.mxu0 %v409
        %v537 = vpop.f32.mrf.mxu0
        %v538 = vadd.f32 0.0, %v537
        %539 = vdwg.mxu0
        %v540 = vadd.f32 %v410, %v476
        %v541 = vadd.f32 %v411, %v517
        %v542 = vadd.f32 %v412, %v479
        %v543 = vadd.f32 %v413, %v520
        %v544 = vadd.f32 %v414, %v482
        %v545 = vadd.f32 %v415, %v523
        %v546 = vadd.f32 %v416, %v485
        %v547 = vadd.f32 %v417, %v526
        %v548 = vadd.f32 %v418, %v488
        %v549 = vadd.f32 %v419, %v529
        %v550 = vadd.f32 %v420, %v491
        %v551 = vadd.f32 %v421, %v532
        %v552 = vadd.f32 %v422, %v494
        %v553 = vadd.f32 %v423, %v535
        %v554 = vadd.f32 %v424, %v497
        %v555 = vadd.f32 %v425, %v538
        %556 = vst [vmem:[#allocation2] sm:$0xff] %v540
        %557 = vst [vmem:[#allocation2 + $0x8] sm:$0xff] %v541
        %558 = vst [vmem:[#allocation2 + $0x10] sm:$0xff] %v542
        %559 = vst [vmem:[#allocation2 + $0x18] sm:$0xff] %v543
        %560 = vst [vmem:[#allocation2 + $0x20] sm:$0xff] %v544
        %561 = vst [vmem:[#allocation2 + $0x28] sm:$0xff] %v545
        %562 = vst [vmem:[#allocation2 + $0x30] sm:$0xff] %v546
        %563 = vst [vmem:[#allocation2 + $0x38] sm:$0xff] %v547
        %564 = vst [vmem:[#allocation2 + $0x40] sm:$0xff] %v548
        %565 = vst [vmem:[#allocation2 + $0x48] sm:$0xff] %v549
        %566 = vst [vmem:[#allocation2 + $0x50] sm:$0xff] %v550
        %567 = vst [vmem:[#allocation2 + $0x58] sm:$0xff] %v551
        %568 = vst [vmem:[#allocation2 + $0x60] sm:$0xff] %v552
        %569 = vst [vmem:[#allocation2 + $0x68] sm:$0xff] %v553
        %570 = vst [vmem:[#allocation2 + $0x70] sm:$0xff] %v554
        %571 = vst [vmem:[#allocation2 + $0x78] sm:$0xff] %v555
        %v572 = vld [vmem:[#allocation3] sm:$0xff]
        %v573 = vld [vmem:[#allocation3 + $0x8] sm:$0xff]
        %v574 = vld [vmem:[#allocation3 + $0x10] sm:$0xff]
        %v575 = vld [vmem:[#allocation3 + $0x18] sm:$0xff]
        %v576 = vld [vmem:[#allocation3 + $0x20] sm:$0xff]
        %v577 = vld [vmem:[#allocation3 + $0x28] sm:$0xff]
        %v578 = vld [vmem:[#allocation3 + $0x30] sm:$0xff]
        %v579 = vld [vmem:[#allocation3 + $0x38] sm:$0xff]
        %v580 = vmul.f32 %v402, %v402
        %v581 = vmul.f32 %v403, %v403
        %v582 = vmul.f32 %v404, %v404
        %v583 = vmul.f32 %v405, %v405
        %v584 = vmul.f32 %v406, %v406
        %v585 = vmul.f32 %v407, %v407
        %v586 = vmul.f32 %v408, %v408
        %v587 = vmul.f32 %v409, %v409
        %v588 = vld [vmem:[#allocation9] sm:$0xff]
        %v589 = vld [vmem:[#allocation9 + $0x8] sm:$0xff]
        %v590 = vld [vmem:[#allocation9 + $0x10] sm:$0xff]
        %v591 = vld [vmem:[#allocation9 + $0x18] sm:$0xff]
        %v592 = vld [vmem:[#allocation9 + $0x20] sm:$0xff]
        %v593 = vld [vmem:[#allocation9 + $0x28] sm:$0xff]
        %v594 = vld [vmem:[#allocation9 + $0x30] sm:$0xff]
        %v595 = vld [vmem:[#allocation9 + $0x38] sm:$0xff]
        %v596 = vld [vmem:[#allocation9 + $0x40] sm:$0xff]
        %v597 = vld [vmem:[#allocation9 + $0x48] sm:$0xff]
        %v598 = vld [vmem:[#allocation9 + $0x50] sm:$0xff]
        %v599 = vld [vmem:[#allocation9 + $0x58] sm:$0xff]
        %v600 = vld [vmem:[#allocation9 + $0x60] sm:$0xff]
        %v601 = vld [vmem:[#allocation9 + $0x68] sm:$0xff]
        %v602 = vld [vmem:[#allocation9 + $0x70] sm:$0xff]
        %v603 = vld [vmem:[#allocation9 + $0x78] sm:$0xff]
        %604 = vmatpush.msra.mxu0 %v603
        %605 = vmatpush.msra.mxu0 %v602
        %606 = vmatpush.msra.mxu0 %v601
        %607 = vmatpush.msra.mxu0 %v600
        %608 = vmatpush.msra.mxu0 %v599
        %609 = vmatpush.msra.mxu0 %v598
        %610 = vmatpush.msra.mxu0 %v597
        %611 = vmatpush.msra.mxu0 %v596
        %612 = vmatpush.msra.mxu0 %v595
        %613 = vmatpush.msra.mxu0 %v594
        %614 = vmatpush.msra.mxu0 %v593
        %615 = vmatpush.msra.mxu0 %v592
        %616 = vmatpush.msra.mxu0 %v591
        %617 = vmatpush.msra.mxu0 %v590
        %618 = vmatpush.msra.mxu0 %v589
        %619 = vmatpush.msra.mxu0 %v588
        %620 = vmatmul.f32.gmra.mxu0 %v580
        %v621 = vpop.f32.mrf.mxu0
        %v622 = vadd.f32 0.0, %v621
        %623 = vmatmul.f32.gmra.mxu0 %v581
        %v624 = vpop.f32.mrf.mxu0
        %v625 = vadd.f32 0.0, %v624
        %626 = vmatmul.f32.gmra.mxu0 %v582
        %v627 = vpop.f32.mrf.mxu0
        %v628 = vadd.f32 0.0, %v627
        %629 = vmatmul.f32.gmra.mxu0 %v583
        %v630 = vpop.f32.mrf.mxu0
        %v631 = vadd.f32 0.0, %v630
        %632 = vmatmul.f32.gmra.mxu0 %v584
        %v633 = vpop.f32.mrf.mxu0
        %v634 = vadd.f32 0.0, %v633
        %635 = vmatmul.f32.gmra.mxu0 %v585
        %v636 = vpop.f32.mrf.mxu0
        %v637 = vadd.f32 0.0, %v636
        %638 = vmatmul.f32.gmra.mxu0 %v586
        %v639 = vpop.f32.mrf.mxu0
        %v640 = vadd.f32 0.0, %v639
        %641 = vmatmul.f32.gmra.mxu0 %v587
        %v642 = vpop.f32.mrf.mxu0
        %v643 = vadd.f32 0.0, %v642
        %644 = vdwg.mxu0
        %v645 = vadd.f32 %v572, %v622
        %v646 = vadd.f32 %v573, %v625
        %v647 = vadd.f32 %v574, %v628
        %v648 = vadd.f32 %v575, %v631
        %v649 = vadd.f32 %v576, %v634
        %v650 = vadd.f32 %v577, %v637
        %v651 = vadd.f32 %v578, %v640
        %v652 = vadd.f32 %v579, %v643
        %653 = vst [vmem:[#allocation3] sm:$0xff] %v645
        %654 = vst [vmem:[#allocation3 + $0x8] sm:$0xff] %v646
        %655 = vst [vmem:[#allocation3 + $0x10] sm:$0xff] %v647
        %656 = vst [vmem:[#allocation3 + $0x18] sm:$0xff] %v648
        %657 = vst [vmem:[#allocation3 + $0x20] sm:$0xff] %v649
        %658 = vst [vmem:[#allocation3 + $0x28] sm:$0xff] %v650
        %659 = vst [vmem:[#allocation3 + $0x30] sm:$0xff] %v651
        %660 = vst [vmem:[#allocation3 + $0x38] sm:$0xff] %v652
        // Predicated region
        $region57: #{tpu_custom_call.1} parent=39 // pred_check
          %p661 = pneg %p364
        $region58: #{tpu_custom_call.1} parent=39 // pred_check_branch
          %663 = sbr.rel (%p661) target = $region60
        $region59: #{tpu_custom_call.1} parent=39 // pred_region
          %v664 = vld [vmem:[#allocation2] sm:$0xff]
          %v665 = vld [vmem:[#allocation2 + $0x10] sm:$0xff]
          %v666 = vld [vmem:[#allocation2 + $0x20] sm:$0xff]
          %v667 = vld [vmem:[#allocation2 + $0x30] sm:$0xff]
          %v668 = vld [vmem:[#allocation2 + $0x40] sm:$0xff]
          %v669 = vld [vmem:[#allocation2 + $0x50] sm:$0xff]
          %v670 = vld [vmem:[#allocation2 + $0x60] sm:$0xff]
          %v671 = vld [vmem:[#allocation2 + $0x70] sm:$0xff]
          %v672 = vld [vmem:[#allocation2 + $0x8] sm:$0xff]
          %v673 = vld [vmem:[#allocation2 + $0x18] sm:$0xff]
          %v674 = vld [vmem:[#allocation2 + $0x28] sm:$0xff]
          %v675 = vld [vmem:[#allocation2 + $0x38] sm:$0xff]
          %v676 = vld [vmem:[#allocation2 + $0x48] sm:$0xff]
          %v677 = vld [vmem:[#allocation2 + $0x58] sm:$0xff]
          %v678 = vld [vmem:[#allocation2 + $0x68] sm:$0xff]
          %v679 = vld [vmem:[#allocation2 + $0x78] sm:$0xff]
          %v680 = vmul.f32 %v664, %v672
          %v681 = vmul.f32 %v665, %v673
          %v682 = vmul.f32 %v666, %v674
          %v683 = vmul.f32 %v667, %v675
          %v684 = vmul.f32 %v668, %v676
          %v685 = vmul.f32 %v669, %v677
          %v686 = vmul.f32 %v670, %v678
          %v687 = vmul.f32 %v671, %v679
          %v688 = vld [vmem:[#allocation3] sm:$0xff]
          %v689 = vld [vmem:[#allocation3 + $0x8] sm:$0xff]
          %v690 = vld [vmem:[#allocation3 + $0x10] sm:$0xff]
          %v691 = vld [vmem:[#allocation3 + $0x18] sm:$0xff]
          %v692 = vld [vmem:[#allocation3 + $0x20] sm:$0xff]
          %v693 = vld [vmem:[#allocation3 + $0x28] sm:$0xff]
          %v694 = vld [vmem:[#allocation3 + $0x30] sm:$0xff]
          %v695 = vld [vmem:[#allocation3 + $0x38] sm:$0xff]
          %v696 = vadd.f32 %v680, %v688
          %v697 = vadd.f32 %v681, %v689
          %v698 = vadd.f32 %v682, %v690
          %v699 = vadd.f32 %v683, %v691
          %v700 = vadd.f32 %v684, %v692
          %v701 = vadd.f32 %v685, %v693
          %v702 = vadd.f32 %v686, %v694
          %v703 = vadd.f32 %v687, %v695
          %704 = vst [vmem:[%s350] sm:$0xff] %v696
          %705 = vst [vmem:[%s350 + $0x8] sm:$0xff] %v697
          %706 = vst [vmem:[%s350 + $0x10] sm:$0xff] %v698
          %707 = vst [vmem:[%s350 + $0x18] sm:$0xff] %v699
          %708 = vst [vmem:[%s350 + $0x20] sm:$0xff] %v700
          %709 = vst [vmem:[%s350 + $0x28] sm:$0xff] %v701
          %710 = vst [vmem:[%s350 + $0x30] sm:$0xff] %v702
          %711 = vst [vmem:[%s350 + $0x38] sm:$0xff] %v703
        $region60: #{tpu_custom_call.1} parent=39 // pred_fallthru
          _
        %s712 = sand.u32 %s188, 1
        %s713 = scalar_lea.sflag [#allocation6], %s712
        %s714 = sand.u32 %s188, 1
        %s715 = smul.addr %s714, 64
        %s716 = scalar_lea.vmem [#allocation10], %s715
        // Predicated region
        $region61: #{tpu_custom_call.1} parent=39 // pred_check
          %p717 = pneg %p198
        $region62: #{tpu_custom_call.1} parent=39 // pred_check_branch
          %719 = sbr.rel (%p717) target = $region64
        $region63: #{tpu_custom_call.1} parent=39 // pred_region
          %s720 = smul.u32 8, %s28
          %722 = vsyncadd %s713, 0
          %s723 = sadd.s32 %s29, %s720
          %s724 = smul.addr %s723, 8
          %s725 = scalar_lea.hbm %s5, %s724
          %s726 = sshll.u32 %s716, 4
          %s727 = int_to_ptr.vmem [resolvable:$true] %s726
          %s728 = sshll.u32 %s725, 4
          %s729 = int_to_ptr.hbm [resolvable:$true] %s728
          %734 = dma.vmem_to_hbm [thread:$0]  %s727, 1024, %s729, %s713, 128, 128, 8
        $region64: #{tpu_custom_call.1} parent=39 // pred_fallthru
          _
      $region40: #{tpu_custom_call.1} parent=5 // pred_fallthru
        _
      %p735 = scmp.le.s32.totalorder 2, %s18
      // Predicated region
      $region65: #{tpu_custom_call.1} parent=5 // pred_check
        %p736 = pneg %p735
      $region66: #{tpu_custom_call.1} parent=5 // pred_check_branch
        %738 = sbr.rel (%p736) target = $region68
      $region67: #{tpu_custom_call.1} parent=5 // pred_region
        %s739 = ssub.s32 %s18, 2
        // Predicated region
        $region69: #{tpu_custom_call.1} parent=67 // pred_check
          %p740 = pneg %p204
        $region70: #{tpu_custom_call.1} parent=67 // pred_check_branch
          %742 = sbr.rel (%p740) target = $region72
        $region71: #{tpu_custom_call.1} parent=67 // pred_region
          %s743 = sand.u32 %s189, 1
          %s744 = scalar_lea.sflag [#allocation6], %s743
          %s745 = sand.u32 %s189, 1
          %s746 = smul.addr %s745, 64
          %s747 = scalar_lea.vmem [#allocation10], %s746
          %749 = dma.done %s744, 1024
        $region72: #{tpu_custom_call.1} parent=67 // pred_fallthru
          _
      $region68: #{tpu_custom_call.1} parent=5 // pred_fallthru
        _
    $region6: #{tpu_custom_call.1} parent=1 // loop_footer
      %s22 = sadd.s32 1, %s18
    $region7: #{tpu_custom_call.1} parent=1 // loop_footer_branch
      %17 = sbr.rel target = $region3
    $region8: #{tpu_custom_call.1} parent=1 // loop_exit
      _
    %750 = vsyncpa [#allocation5], 1
    %s751 = scalar_lea.sflag [#allocation5], 1
    %752 = vsyncpa %s751, 1
    %753 = vsyncpa [#allocation8], 1
    %754 = vsyncpa [#allocation6], 1
    %s755 = scalar_lea.sflag [#allocation6], 1
    %756 = vsyncpa %s755, 1

</llo_original>
